<compile_context>
chip_gen: v7x
topology: tpu7x:2x2x1
jax: 0.10.0
libtpu: 0.0.40
codegen_flags: <defaults>
</compile_context>

<pallas_src>
import jax
import jax.numpy as jnp
from jax.experimental import pallas as pl
from jax.experimental.pallas import tpu as pltpu

LANE = 128
DEFAULT_TN = 512          # lane-axis tile of the flattened output; sweepable 512-2048
VMEM_LIMIT = 32 * 1024 * 1024


def _round_up(x, m):
    return ((x + m - 1) // m) * m


# ------------------------------ Pallas kernels ------------------------------

def _conv_mm_stats_kernel(w_ref, a_ref, y_ref, psum_ref, psq_ref):
    """One output tile of the conv:  y = W (C_out,Kp) @ A (Kp,tn), lane-dense output.

    Also emits per-tile partial BN statistics (sum, sum of squares per channel) so the
    batch-norm stats never require an extra full pass over the conv output.
    """
    acc = jnp.dot(w_ref[...], a_ref[...], preferred_element_type=jnp.float32)  # (C_out, tn) f32
    y_ref[...] = acc
    s = jnp.sum(acc, axis=1, keepdims=True)            # (C_out, 1) lane-reduce (XLU)
    sq = jnp.sum(acc * acc, axis=1, keepdims=True)
    psum_ref[...] = jnp.broadcast_to(s, psum_ref.shape)
    psq_ref[...] = jnp.broadcast_to(sq, psq_ref.shape)


def _bn_relu_kernel(y_ref, scale_ref, shift_ref, o_ref):
    """Per-channel affine (folded BN) + ReLU on a lane-dense (C_out, tn) tile."""
    z = y_ref[...] * scale_ref[...] + shift_ref[...]   # (C_out,1) scalars broadcast over lanes
    o_ref[...] = jnp.maximum(z, 0.0)


# --------------------------------- wrappers ---------------------------------

def _im2col_transposed(x_ncdhw, Kd, Kh, Kw, stride, padding, dilation):
    """Build A^T of shape (K, M): rows = (kd,kh,kw,ci) taps, cols = (n,od,oh,ow).

    Pure data movement (XLA); the compute hot path is the Pallas matmul.
    """
    N, Cin, D, H, W = x_ncdhw.shape
    s, p, d = stride, padding, dilation
    OD = (D + 2 * p - d * (Kd - 1) - 1) // s + 1
    OH = (H + 2 * p - d * (Kh - 1) - 1) // s + 1
    OW = (W + 2 * p - d * (Kw - 1) - 1) // s + 1

    x = jnp.transpose(x_ncdhw, (0, 2, 3, 4, 1))                      # (N, D, H, W, Cin)
    x = jnp.pad(x, ((0, 0), (p, p), (p, p), (p, p), (0, 0)))

    taps = []
    for kd in range(Kd):
        for kh in range(Kh):
            for kw in range(Kw):
                taps.append(
                    x[:, kd * d: kd * d + (OD - 1) * s + 1: s,
                         kh * d: kh * d + (OH - 1) * s + 1: s,
                         kw * d: kw * d + (OW - 1) * s + 1: s, :])   # (N,OD,OH,OW,Cin)
    A = jnp.stack(taps, axis=0)                                       # (K3, N, OD, OH, OW, Cin)
    A = jnp.moveaxis(A, 5, 1)                                         # (K3, Cin, N, OD, OH, OW)
    K = Kd * Kh * Kw * Cin
    M = N * OD * OH * OW
    return A.reshape(K, M), (OD, OH, OW), K, M


def basic_conv3d(x, weight, bias, gamma, beta, *,
                 stride=1, padding=0, dilation=1, eps=1e-5, tn=DEFAULT_TN):
    """Forward of BasicConv3d: Conv3d -> BatchNorm3d (batch stats) -> ReLU.

    x      : (N, C_in, D, H, W)            f32
    weight : (C_out, C_in, Kd, Kh, Kw)     PyTorch Conv3d layout
    bias   : (C_out,)                      (cancelled exactly by train-mode BN)
    gamma  : (C_out,)  BN weight
    beta   : (C_out,)  BN bias
    returns: (N, C_out, OD, OH, OW)        f32
    """
    N, Cin, D, H, W = x.shape
    Cout, _, Kd, Kh, Kw = weight.shape
    del bias  # Conv bias cancels under batch-norm with batch statistics.

    A, (OD, OH, OW), K, M = _im2col_transposed(x, Kd, Kh, Kw, stride, padding, dilation)

    Kp = _round_up(K, LANE)              # aligned contraction dim -> no masked loads
    Mp = _round_up(M, tn)
    A = jnp.pad(A, ((0, Kp - K), (0, Mp - M))).astype(jnp.bfloat16)   # bf16 streaming operand
    Wmat = jnp.transpose(weight, (0, 2, 3, 4, 1)).reshape(Cout, K)     # (C_out, (kd,kh,kw,ci))
    Wmat = jnp.pad(Wmat, ((0, 0), (0, Kp - K))).astype(jnp.bfloat16)

    G = Mp // tn

    # ---- Pass 1: conv matmul (lane-dense output) + fused partial BN stats ----
    conv_flat, psum, psq = pl.pallas_call(
        _conv_mm_stats_kernel,
        out_shape=(jax.ShapeDtypeStruct((Cout, Mp), jnp.float32),
                   jax.ShapeDtypeStruct((G, Cout, LANE), jnp.float32),
                   jax.ShapeDtypeStruct((G, Cout, LANE), jnp.float32)),
        grid=(G,),
        in_specs=[pl.BlockSpec((Cout, Kp), lambda i: (0, 0)),
                  pl.BlockSpec((Kp, tn), lambda i: (0, i))],
        out_specs=(pl.BlockSpec((Cout, tn), lambda i: (0, i)),
                   pl.BlockSpec((1, Cout, LANE), lambda i: (i, 0, 0)),
                   pl.BlockSpec((1, Cout, LANE), lambda i: (i, 0, 0))),
        compiler_params=pltpu.CompilerParams(
            dimension_semantics=("parallel",),
            vmem_limit_bytes=VMEM_LIMIT),
    )(Wmat, A)

    # ---- Finalize batch statistics (tiny, O(G*C_out)) and fold the affine ----
    # Padded M columns of A are all-zero -> conv value 0 -> contribute nothing to sums.
    ch_sum = jnp.sum(psum[:, :, 0], axis=0)                 # (C_out,)
    ch_sq = jnp.sum(psq[:, :, 0], axis=0)
    mean = ch_sum / M
    var = jnp.maximum(ch_sq / M - mean * mean, 0.0)         # biased variance (PyTorch BN fwd)
    scale = gamma / jnp.sqrt(var + eps)
    shift = beta - mean * scale

    # ---- Pass 2: gridded, lane-dense normalize + ReLU ----
    out_flat = pl.pallas_call(
        _bn_relu_kernel,
        out_shape=jax.ShapeDtypeStruct((Cout, Mp), jnp.float32),
        grid=(G,),
        in_specs=[pl.BlockSpec((Cout, tn), lambda i: (0, i)),
                  pl.BlockSpec((Cout, 1), lambda i: (0, 0)),
                  pl.BlockSpec((Cout, 1), lambda i: (0, 0))],
        out_specs=pl.BlockSpec((Cout, tn), lambda i: (0, i)),
        compiler_params=pltpu.CompilerParams(
            dimension_semantics=("parallel",),
            vmem_limit_bytes=VMEM_LIMIT),
    )(conv_flat,
      scale.reshape(Cout, 1).astype(jnp.float32),
      shift.reshape(Cout, 1).astype(jnp.float32))

    out = out_flat[:, :M].reshape(Cout, N, OD, OH, OW)
    return jnp.transpose(out, (1, 0, 2, 3, 4))              # -> NCDHW


# -------------------------------- reference ---------------------------------

def _reference(x, weight, bias, gamma, beta, *, stride, padding, dilation, eps=1e-5):
    dn = jax.lax.conv_dimension_numbers(x.shape, weight.shape, ("NCDHW", "OIDHW", "NCDHW"))
    z = jax.lax.conv_general_dilated(
        x, weight, window_strides=(stride,) * 3, padding=[(padding, padding)] * 3,
        rhs_dilation=(dilation,) * 3, dimension_numbers=dn)
    z = z + bias.reshape(1, -1, 1, 1, 1)
    mean = z.mean(axis=(0, 2, 3, 4), keepdims=True)
    var = z.var(axis=(0, 2, 3, 4), keepdims=True)           # biased, like BN forward
    y = gamma.reshape(1, -1, 1, 1, 1) * (z - mean) / jnp.sqrt(var + eps) \
        + beta.reshape(1, -1, 1, 1, 1)
    return jnp.maximum(y, 0.0)


# ----------------------------------- main ------------------------------------

if __name__ == "__main__":
    key = jax.random.PRNGKey(0)
    in_planes, out_planes = 4, 8
    ksz, stride, padding, dilation = 3, 1, 1, 1
    N, D, H, W = 2, 16, 16, 16

    k1, k2, k3, k4, k5 = jax.random.split(key, 5)
    x = jax.random.normal(k1, (N, in_planes, D, H, W), jnp.float32)

    # Conv3d params (PyTorch-style uniform init), weight layout (C_out, C_in, k, k, k)
    fan_in = in_planes * ksz ** 3
    bound = 1.0 / (fan_in ** 0.5)
    weight = jax.random.uniform(k2, (out_planes, in_planes, ksz, ksz, ksz),
                                jnp.float32, -bound, bound)
    bias = jax.random.uniform(k3, (out_planes,), jnp.float32, -bound, bound)

    # BatchNorm3d affine params (weight ~ 1, bias ~ 0, perturbed deterministically)
    gamma = 1.0 + 0.1 * jax.random.normal(k4, (out_planes,), jnp.float32)
    beta = 0.1 * jax.random.normal(k5, (out_planes,), jnp.float32)

    y = basic_conv3d(x, weight, bias, gamma, beta,
                     stride=stride, padding=padding, dilation=dilation)
    y = jax.block_until_ready(y)

    OD = (D + 2 * padding - dilation * (ksz - 1) - 1) // stride + 1
    assert y.shape == (N, out_planes, OD, OD, OD), y.shape
    assert bool(jnp.all(jnp.isfinite(y)))
    assert bool(jnp.all(y >= 0.0))

    y_ref = _reference(x, weight, bias, gamma, beta,
                       stride=stride, padding=padding, dilation=dilation)
    max_err = float(jnp.max(jnp.abs(y - y_ref)))
    assert max_err < 0.1, f"max abs err vs reference = {max_err}"

    print("KERNEL_OK")
</pallas_src>

<mosaic_0001>
module attributes {stable_mosaic.version = 11 : i64} {
  func.func @_conv_mm_stats_kernel(%arg0: i32, %arg1: memref<8x128xbf16, #tpu.memory_space<vmem>>, %arg2: memref<128x512xbf16, #tpu.memory_space<vmem>>, %arg3: memref<8x512xf32, #tpu.memory_space<vmem>>, %arg4: memref<1x8x128xf32, #tpu.memory_space<vmem>>, %arg5: memref<1x8x128xf32, #tpu.memory_space<vmem>>) attributes {dimension_semantics = [#tpu.dimension_semantics<parallel>], iteration_bounds = array<i64: 16>, scalar_prefetch = 0 : i64, scratch_operands = 0 : i64, tpu.core_type = #tpu.core_type<tc>, window_params = [{pipeline_mode = #tpu.pipeline_mode<synchronous>, transform_indices = @transform_0, window_bounds = array<i64: 8, 128>}, {transform_indices = @transform_1, window_bounds = array<i64: 128, 512>}, {transform_indices = @transform_2, window_bounds = array<i64: 8, 512>}, {transform_indices = @transform_3, window_bounds = array<i64: 1, 8, 128>}, {transform_indices = @transform_4, window_bounds = array<i64: 1, 8, 128>}]} {
    %c0 = arith.constant 0 : index
    %c0_0 = arith.constant 0 : index
    %0 = vector.load %arg1[%c0, %c0_0] : memref<8x128xbf16, #tpu.memory_space<vmem>>, vector<8x128xbf16>
    %c0_1 = arith.constant 0 : index
    %c0_2 = arith.constant 0 : index
    %1 = vector.load %arg2[%c0_1, %c0_2] : memref<128x512xbf16, #tpu.memory_space<vmem>>, vector<128x512xbf16>
    %cst = arith.constant dense<0.000000e+00> : vector<8x512xf32>
    %2 = tpu.matmul %0, %1, %cst {dimension_numbers = #tpu.dot_dimension_numbers<[1], [0], [0], [1], [0, 0, 1, 1], [], []>} : vector<8x128xbf16>, vector<128x512xbf16>, vector<8x512xf32> -> vector<8x512xf32>
    %c0_3 = arith.constant 0 : index
    %c0_4 = arith.constant 0 : index
    %3 = vector.load %arg3[%c0_3, %c0_4] : memref<8x512xf32, #tpu.memory_space<vmem>>, vector<8x512xf32>
    tpu.vector_store %arg3[%c0_3, %c0_4], %2 {strides = array<i32>} : memref<8x512xf32, #tpu.memory_space<vmem>>, vector<8x512xf32>,
    %cst_5 = arith.constant dense<0.000000e+00> : vector<8xf32>
    %4 = vector.multi_reduction <add>, %2, %cst_5 [1] : vector<8x512xf32> to vector<8xf32>
    %5 = vector.shape_cast %4 : vector<8xf32> to vector<8x1xf32>
    %6 = arith.mulf %2, %2 : vector<8x512xf32>
    %cst_6 = arith.constant dense<0.000000e+00> : vector<8xf32>
    %7 = vector.multi_reduction <add>, %6, %cst_6 [1] : vector<8x512xf32> to vector<8xf32>
    %8 = vector.shape_cast %7 : vector<8xf32> to vector<8x1xf32>
    %9 = vector.shape_cast %5 : vector<8x1xf32> to vector<1x8x1xf32>
    %10 = vector.broadcast %9 : vector<1x8x1xf32> to vector<1x8x128xf32>
    %c0_7 = arith.constant 0 : index
    %c0_8 = arith.constant 0 : index
    %c0_9 = arith.constant 0 : index
    %11 = vector.load %arg4[%c0_7, %c0_8, %c0_9] : memref<1x8x128xf32, #tpu.memory_space<vmem>>, vector<1x8x128xf32>
    tpu.vector_store %arg4[%c0_7, %c0_8, %c0_9], %10 {strides = array<i32>} : memref<1x8x128xf32, #tpu.memory_space<vmem>>, vector<1x8x128xf32>,
    %12 = vector.shape_cast %8 : vector<8x1xf32> to vector<1x8x1xf32>
    %13 = vector.broadcast %12 : vector<1x8x1xf32> to vector<1x8x128xf32>
    %c0_10 = arith.constant 0 : index
    %c0_11 = arith.constant 0 : index
    %c0_12 = arith.constant 0 : index
    %14 = vector.load %arg5[%c0_10, %c0_11, %c0_12] : memref<1x8x128xf32, #tpu.memory_space<vmem>>, vector<1x8x128xf32>
    tpu.vector_store %arg5[%c0_10, %c0_11, %c0_12], %13 {strides = array<i32>} : memref<1x8x128xf32, #tpu.memory_space<vmem>>, vector<1x8x128xf32>,
    return
  }
  func.func @transform_0(%arg0: i32) -> (i32, i32) {
    %c0_i32 = arith.constant 0 : i32
    %c0_i32_0 = arith.constant 0 : i32
    %c0_i32_1 = arith.constant 0 : i32
    return %c0_i32, %c0_i32_0 : i32, i32
  }
  func.func @transform_1(%arg0: i32) -> (i32, i32) {
    %c0_i32 = arith.constant 0 : i32
    %c0_i32_0 = arith.constant 0 : i32
    return %c0_i32, %arg0 : i32, i32
  }
  func.func @transform_2(%arg0: i32) -> (i32, i32) {
    %c0_i32 = arith.constant 0 : i32
    %c0_i32_0 = arith.constant 0 : i32
    return %c0_i32, %arg0 : i32, i32
  }
  func.func @transform_3(%arg0: i32) -> (i32, i32, i32) {
    %c0_i32 = arith.constant 0 : i32
    %c0_i32_0 = arith.constant 0 : i32
    %c0_i32_1 = arith.constant 0 : i32
    return %arg0, %c0_i32, %c0_i32_0 : i32, i32, i32
  }
  func.func @transform_4(%arg0: i32) -> (i32, i32, i32) {
    %c0_i32 = arith.constant 0 : i32
    %c0_i32_0 = arith.constant 0 : i32
    %c0_i32_1 = arith.constant 0 : i32
    return %arg0, %c0_i32, %c0_i32_0 : i32, i32, i32
  }
}

</mosaic_0001>

<llo_original>
// kernel: tpu_custom_call.1
$region0: #{tpu_custom_call.1}
  #allocation0 [shape = 'u32[]', space=smem, size = 0x4, offset = 0x4, fixed_abs, tag = 'smem constant byte address 0x4 - core index']
  #allocation1 [shape = 'u32[144,128]{1,0:T(1,128)}', space=vmem, size = 0x12000, scoped, tag = 'internal scratch']
  %s0 = inlined_call_operand.hbm [shape: bf16[8,128], index: 0, kind: input, shape index: {}]
  %s1 = inlined_call_operand.hbm [shape: bf16[128,8192], index: 1, kind: input, shape index: {}]
  %s2 = inlined_call_operand.hbm [shape: f32[8,8192], index: 2, kind: output, shape index: {0}]
  %s3 = inlined_call_operand.hbm [shape: f32[16,8,128], index: 3, kind: output, shape index: {1}]
  %s4 = inlined_call_operand.hbm [shape: f32[16,8,128], index: 4, kind: output, shape index: {2}]
  %5 = xla_tuple %s2, %s3, %s4
  %s6 = sld [smem:[#allocation0]]
  $region65: #{tpu_custom_call.1} parent=0
    _
  %s8 = ssub.s32 1, %s6
  %s9 = scalar_select 0, %s8, %s6
  $region1: #{tpu_custom_call.1} parent=0
    #allocation2 [shape = 'u8[2048]{0}', space=vmem, size = 0x800, scoped, tag = 'input window, operand 0, single buffered']
    #allocation3 [shape = 's32[2]{0}', space=sflag, size = 0x8, scoped, tag = 'scoped memory for tpu_custom_call.1']
    #allocation4 [shape = 's32[2]{0}', space=sflag, size = 0x8, scoped, tag = 'scoped memory for tpu_custom_call.1']
    #allocation5 [shape = 'u8[262144]{0}', space=vmem, size = 0x40000, scoped, tag = 'input window, operand 1']
    #allocation6 [shape = 's32[2]{0}', space=sflag, size = 0x8, scoped, tag = 'scoped memory for tpu_custom_call.1']
    #allocation7 [shape = 'u8[32768]{0}', space=vmem, size = 0x8000, scoped, tag = 'output window, operand 0']
    #allocation8 [shape = 'u8[8192]{0}', space=vmem, size = 0x2000, scoped, tag = 'output window, operand 1']
    #allocation9 [shape = 's32[2]{0}', space=sflag, size = 0x8, scoped, tag = 'scoped memory for tpu_custom_call.1']
    #allocation10 [shape = 'u8[8192]{0}', space=vmem, size = 0x2000, scoped, tag = 'output window, operand 2']
    %10 = vsyncpa [#allocation3], 0
    %11 = vsyncpa [#allocation6], 0
    %s12 = scalar_lea.sflag [#allocation6], 1
    %13 = vsyncpa %s12, 0
    %14 = vsyncpa [#allocation4], 0
    %s15 = scalar_lea.sflag [#allocation4], 1
    %16 = vsyncpa %s15, 0
    %17 = vsyncpa [#allocation9], 0
    %s18 = scalar_lea.sflag [#allocation9], 1
    %19 = vsyncpa %s18, 0
    loop: start=0, step=1, limit=18
    $region2: #{tpu_custom_call.1} parent=1 // loop_pre_header
      _
    $region3: #{tpu_custom_call.1} parent=1 // loop_header
      %s21 = sphi 0, %s25
      %p22 = scmp.ge.s32.totalorder %s21, 18
      %s29 = sphi 0, %s29
      %s31 = sphi 0, %s29
      %s32 = sphi 0, %s31
      %s46 = sphi 0, %s32
      %s52 = sphi 0, %s54
      %s55 = sphi 0, %s52
      %s56 = sphi 0, %s55
      %s72 = sphi 0, %s56
      %s78 = sphi 0, %s80
      %s81 = sphi 0, %s78
      %s82 = sphi 0, %s81
      %s98 = sphi 0, %s82
      %s104 = sphi 0, %s106
      %s107 = sphi 0, %s104
      %s108 = sphi 0, %s107
      %s124 = sphi 0, %s108
      %s130 = sphi 0, %s132
      %s133 = sphi 0, %s130
      %s134 = sphi 0, %s133
      %s150 = sphi 0, %s134
    $region4: #{tpu_custom_call.1} parent=1 // loop_header_branch
      %24 = sbr.rel (%p22) target = $region8
    $region5: #{tpu_custom_call.1} parent=1 // loop_body
      %s26 = ssub.s32 %s21, 1
      %s27 = ssub.s32 %s21, 2
      %s28 = sadd.s32 %s21, 1
      %s30 = sadd.s32 %s29, 1
      %p33 = scmp.eq.s32.totalorder %s21, 15
      %p34 = scmp.ne.s32.totalorder %s29, %s31
      %p35 = scmp.eq.s32.totalorder %s21, 0
      %p36 = por %p34, %p35
      %p37 = scmp.ne.s32.totalorder %s29, %s31
      %p38 = scmp.eq.s32.totalorder %s26, 15
      %p39 = por %p37, %p38
      %p40 = scmp.ne.s32.totalorder %s31, %s32
      %p41 = scmp.eq.s32.totalorder %s26, 0
      %p42 = por %p40, %p41
      %p43 = scmp.ne.s32.totalorder %s31, %s32
      %p44 = scmp.eq.s32.totalorder %s27, 15
      %p45 = por %p43, %p44
      %p47 = scmp.ne.s32.totalorder %s32, %s46
      %p48 = scmp.eq.s32.totalorder %s27, 0
      %p49 = por %p47, %p48
      %s50 = ssub.s32 %s21, %s28
      %p51 = scmp.eq.s32.totalorder %s50, 0
      %s53 = sadd.s32 %s52, 1
      %s54 = scalar_select %p51, %s52, %s53
      %p57 = pneg %p51
      %p58 = scmp.eq.s32.totalorder %s21, 15
      %p59 = por %p57, %p58
      %p60 = scmp.ne.s32.totalorder %s52, %s55
      %p61 = scmp.eq.s32.totalorder %s21, 0
      %p62 = por %p60, %p61
      %p63 = scmp.ne.s32.totalorder %s52, %s55
      %p64 = scmp.eq.s32.totalorder %s26, 15
      %p65 = por %p63, %p64
      %p66 = scmp.ne.s32.totalorder %s55, %s56
      %p67 = scmp.eq.s32.totalorder %s26, 0
      %p68 = por %p66, %p67
      %p69 = scmp.ne.s32.totalorder %s55, %s56
      %p70 = scmp.eq.s32.totalorder %s27, 15
      %p71 = por %p69, %p70
      %p73 = scmp.ne.s32.totalorder %s56, %s72
      %p74 = scmp.eq.s32.totalorder %s27, 0
      %p75 = por %p73, %p74
      %s76 = ssub.s32 %s21, %s28
      %p77 = scmp.eq.s32.totalorder %s76, 0
      %s79 = sadd.s32 %s78, 1
      %s80 = scalar_select %p77, %s78, %s79
      %p83 = pneg %p77
      %p84 = scmp.eq.s32.totalorder %s21, 15
      %p85 = por %p83, %p84
      %p86 = scmp.ne.s32.totalorder %s78, %s81
      %p87 = scmp.eq.s32.totalorder %s21, 0
      %p88 = por %p86, %p87
      %p89 = scmp.ne.s32.totalorder %s78, %s81
      %p90 = scmp.eq.s32.totalorder %s26, 15
      %p91 = por %p89, %p90
      %p92 = scmp.ne.s32.totalorder %s81, %s82
      %p93 = scmp.eq.s32.totalorder %s26, 0
      %p94 = por %p92, %p93
      %p95 = scmp.ne.s32.totalorder %s81, %s82
      %p96 = scmp.eq.s32.totalorder %s27, 15
      %p97 = por %p95, %p96
      %p99 = scmp.ne.s32.totalorder %s82, %s98
      %p100 = scmp.eq.s32.totalorder %s27, 0
      %p101 = por %p99, %p100
      %s102 = ssub.s32 %s21, %s28
      %p103 = scmp.eq.s32.totalorder %s102, 0
      %s105 = sadd.s32 %s104, 1
      %s106 = scalar_select %p103, %s104, %s105
      %p109 = pneg %p103
      %p110 = scmp.eq.s32.totalorder %s21, 15
      %p111 = por %p109, %p110
      %p112 = scmp.ne.s32.totalorder %s104, %s107
      %p113 = scmp.eq.s32.totalorder %s21, 0
      %p114 = por %p112, %p113
      %p115 = scmp.ne.s32.totalorder %s104, %s107
      %p116 = scmp.eq.s32.totalorder %s26, 15
      %p117 = por %p115, %p116
      %p118 = scmp.ne.s32.totalorder %s107, %s108
      %p119 = scmp.eq.s32.totalorder %s26, 0
      %p120 = por %p118, %p119
      %p121 = scmp.ne.s32.totalorder %s107, %s108
      %p122 = scmp.eq.s32.totalorder %s27, 15
      %p123 = por %p121, %p122
      %p125 = scmp.ne.s32.totalorder %s108, %s124
      %p126 = scmp.eq.s32.totalorder %s27, 0
      %p127 = por %p125, %p126
      %s128 = ssub.s32 %s21, %s28
      %p129 = scmp.eq.s32.totalorder %s128, 0
      %s131 = sadd.s32 %s130, 1
      %s132 = scalar_select %p129, %s130, %s131
      %p135 = pneg %p129
      %p136 = scmp.eq.s32.totalorder %s21, 15
      %p137 = por %p135, %p136
      %p138 = scmp.ne.s32.totalorder %s130, %s133
      %p139 = scmp.eq.s32.totalorder %s21, 0
      %p140 = por %p138, %p139
      %p141 = scmp.ne.s32.totalorder %s130, %s133
      %p142 = scmp.eq.s32.totalorder %s26, 15
      %p143 = por %p141, %p142
      %p144 = scmp.ne.s32.totalorder %s133, %s134
      %p145 = scmp.eq.s32.totalorder %s26, 0
      %p146 = por %p144, %p145
      %p147 = scmp.ne.s32.totalorder %s133, %s134
      %p148 = scmp.eq.s32.totalorder %s27, 15
      %p149 = por %p147, %p148
      %p151 = scmp.ne.s32.totalorder %s134, %s150
      %p152 = scmp.eq.s32.totalorder %s27, 0
      %p153 = por %p151, %p152
      %p154 = scmp.le.s32.totalorder 1, %s21
      %p155 = scmp.lt.s32.totalorder %s21, 17
      %p156 = pnand %p154, %p155
      %p157 = pneg %p156
      // Predicated region
      $region9: #{tpu_custom_call.1} parent=5 // pred_check
        _
      $region10: #{tpu_custom_call.1} parent=5 // pred_check_branch
        %159 = sbr.rel (%p156) target = $region12
      $region11: #{tpu_custom_call.1} parent=5 // pred_region
        %s160 = ssub.s32 %s21, 1
        // Predicated region
        $region13: #{tpu_custom_call.1} parent=11 // pred_check
          %p161 = pneg %p42
        $region14: #{tpu_custom_call.1} parent=11 // pred_check_branch
          %163 = sbr.rel (%p161) target = $region16
        $region15: #{tpu_custom_call.1} parent=11 // pred_region
          %s165 = ssub.s32 64, 64
          %166 = vsyncadd [#allocation3], %s165
          %s168 = sshll.u32 [#allocation2], 4
          %s169 = int_to_ptr.vmem [resolvable:$true] %s168
          %171 = dma.hbm_to_vmem [thread:$0]  %s0, 64, %s169, [#allocation3]
        $region16: #{tpu_custom_call.1} parent=11 // pred_fallthru
          _
      $region12: #{tpu_custom_call.1} parent=5 // pred_fallthru
        _
      %p172 = scmp.lt.s32.totalorder %s21, 16
      // Predicated region
      $region17: #{tpu_custom_call.1} parent=5 // pred_check
        %p173 = pneg %p172
      $region18: #{tpu_custom_call.1} parent=5 // pred_check_branch
        %175 = sbr.rel (%p173) target = $region20
      $region19: #{tpu_custom_call.1} parent=5 // pred_region
        // Predicated region
        $region21: #{tpu_custom_call.1} parent=19 // pred_check
          %p176 = pneg %p62
        $region22: #{tpu_custom_call.1} parent=19 // pred_check_branch
          %178 = sbr.rel (%p176) target = $region24
        $region23: #{tpu_custom_call.1} parent=19 // pred_region
          %s179 = sand.u32 %s52, 1
          %s180 = scalar_lea.sflag [#allocation6], %s179
          %s181 = sand.u32 %s52, 1
          %s182 = smul.addr %s181, 256
          %s183 = scalar_lea.vmem [#allocation5], %s182
          %s184 = smul.u32 4, %s21
          %s186 = ssub.s32 4096, 4096
          %187 = vsyncadd %s180, %s186
          %s188 = smul.addr %s184, 64
          %s189 = scalar_lea.hbm %s1, %s188
          %s190 = sshll.u32 %s183, 4
          %s191 = int_to_ptr.vmem [resolvable:$true] %s190
          %196 = dma.hbm_to_vmem [thread:$0]  %s189, 4096, %s191, %s180, 4096, 256, 16
        $region24: #{tpu_custom_call.1} parent=19 // pred_fallthru
          _
      $region20: #{tpu_custom_call.1} parent=5 // pred_fallthru
        _
      %p197 = scmp.le.s32.totalorder 1, %s21
      %p198 = scmp.lt.s32.totalorder %s21, 17
      %p199 = pnand %p197, %p198
      %p200 = pneg %p199
      // Predicated region
      $region25: #{tpu_custom_call.1} parent=5 // pred_check
        _
      $region26: #{tpu_custom_call.1} parent=5 // pred_check_branch
        %202 = sbr.rel (%p199) target = $region28
      $region27: #{tpu_custom_call.1} parent=5 // pred_region
        %s203 = ssub.s32 %s21, 1
        // Predicated region
        $region29: #{tpu_custom_call.1} parent=27 // pred_check
          %p204 = pneg %p42
        $region30: #{tpu_custom_call.1} parent=27 // pred_check_branch
          %206 = sbr.rel (%p204) target = $region32
        $region31: #{tpu_custom_call.1} parent=27 // pred_region
          %207 = dma.done [#allocation3], 64
        $region32: #{tpu_custom_call.1} parent=27 // pred_fallthru
          _
        %s208 = sand.u32 %s55, 1
        %s209 = scalar_lea.sflag [#allocation6], %s208
        %s210 = sand.u32 %s55, 1
        %s211 = smul.addr %s210, 256
        %s212 = scalar_lea.vmem [#allocation5], %s211
        // Predicated region
        $region33: #{tpu_custom_call.1} parent=27 // pred_check
          %p213 = pneg %p68
        $region34: #{tpu_custom_call.1} parent=27 // pred_check_branch
          %215 = sbr.rel (%p213) target = $region36
        $region35: #{tpu_custom_call.1} parent=27 // pred_region
          %216 = dma.done %s209, 4096
        $region36: #{tpu_custom_call.1} parent=27 // pred_fallthru
          _
        %p217 = pneg %p42
        %p218 = pneg %p39
        %s219 = sand.u32 %s55, 1
        %s220 = scalar_lea.sflag [#allocation6], %s219
        %s221 = sand.u32 %s55, 1
        %s222 = smul.addr %s221, 256
        %s223 = scalar_lea.vmem [#allocation5], %s222
        %p224 = pneg %p68
        %p225 = pneg %p65
        %p226 = pneg %p94
        %p227 = pneg %p91
        %s228 = sand.u32 %s81, 1
        %s229 = scalar_lea.sflag [#allocation4], %s228
        %s230 = sand.u32 %s81, 1
        %s231 = smul.addr %s230, 32
        %s232 = scalar_lea.vmem [#allocation7], %s231
        %p233 = pneg %p120
        %p234 = pneg %p117
        %s235 = sand.u32 %s26, 1
        %s236 = scalar_lea.sflag [#allocation9], %s235
        %s237 = sand.u32 %s107, 1
        %s238 = smul.addr %s237, 8
        %s239 = scalar_lea.vmem [#allocation8], %s238
        %p240 = pneg %p146
        %p241 = pneg %p143
        %s242 = sand.u32 %s26, 1
        %s243 = scalar_lea.sflag [#allocation9], %s242
        %s244 = sand.u32 %s133, 1
        %s245 = smul.addr %s244, 8
        %s246 = scalar_lea.vmem [#allocation10], %s245
        %s247 = smul.u32 4, %s26
        %s248 = smul.u32 4, %s26
        %v250 = vld [vmem:[#allocation2] sm:$0xf]
        %v251 = vld [vmem:[%s212] sm:$0xff]
        %v252 = vld [vmem:[%s212 + $0x8] sm:$0xff]
        %v253 = vld [vmem:[%s212 + $0x10] sm:$0xff]
        %v254 = vld [vmem:[%s212 + $0x18] sm:$0xff]
        %v255 = vld [vmem:[%s212 + $0x20] sm:$0xff]
        %v256 = vld [vmem:[%s212 + $0x28] sm:$0xff]
        %v257 = vld [vmem:[%s212 + $0x30] sm:$0xff]
        %v258 = vld [vmem:[%s212 + $0x38] sm:$0xff]
        %v259 = vld [vmem:[%s212 + $0x40] sm:$0xff]
        %v260 = vld [vmem:[%s212 + $0x48] sm:$0xff]
        %v261 = vld [vmem:[%s212 + $0x50] sm:$0xff]
        %v262 = vld [vmem:[%s212 + $0x58] sm:$0xff]
        %v263 = vld [vmem:[%s212 + $0x60] sm:$0xff]
        %v264 = vld [vmem:[%s212 + $0x68] sm:$0xff]
        %v265 = vld [vmem:[%s212 + $0x70] sm:$0xff]
        %v266 = vld [vmem:[%s212 + $0x78] sm:$0xff]
        %v267 = vld [vmem:[%s212 + $0x80] sm:$0xff]
        %v268 = vld [vmem:[%s212 + $0x88] sm:$0xff]
        %v269 = vld [vmem:[%s212 + $0x90] sm:$0xff]
        %v270 = vld [vmem:[%s212 + $0x98] sm:$0xff]
        %v271 = vld [vmem:[%s212 + $0xa0] sm:$0xff]
        %v272 = vld [vmem:[%s212 + $0xa8] sm:$0xff]
        %v273 = vld [vmem:[%s212 + $0xb0] sm:$0xff]
        %v274 = vld [vmem:[%s212 + $0xb8] sm:$0xff]
        %v275 = vld [vmem:[%s212 + $0xc0] sm:$0xff]
        %v276 = vld [vmem:[%s212 + $0xc8] sm:$0xff]
        %v277 = vld [vmem:[%s212 + $0xd0] sm:$0xff]
        %v278 = vld [vmem:[%s212 + $0xd8] sm:$0xff]
        %v279 = vld [vmem:[%s212 + $0xe0] sm:$0xff]
        %v280 = vld [vmem:[%s212 + $0xe8] sm:$0xff]
        %v281 = vld [vmem:[%s212 + $0xf0] sm:$0xff]
        %v282 = vld [vmem:[%s212 + $0xf8] sm:$0xff]
        %v315 = vunpack.c.l.b16 %v251
        %v316 = vunpack.c.h.b16 %v251
        %v317 = vunpack.c.l.b16 %v252
        %v318 = vunpack.c.h.b16 %v252
        %v319 = vunpack.c.l.b16 %v253
        %v320 = vunpack.c.h.b16 %v253
        %v321 = vunpack.c.l.b16 %v254
        %v322 = vunpack.c.h.b16 %v254
        %v323 = vunpack.c.l.b16 %v255
        %v324 = vunpack.c.h.b16 %v255
        %v325 = vunpack.c.l.b16 %v256
        %v326 = vunpack.c.h.b16 %v256
        %v327 = vunpack.c.l.b16 %v257
        %v328 = vunpack.c.h.b16 %v257
        %v329 = vunpack.c.l.b16 %v258
        %v330 = vunpack.c.h.b16 %v258
        %v331 = vunpack.c.l.b16 %v259
        %v332 = vunpack.c.h.b16 %v259
        %v333 = vunpack.c.l.b16 %v260
        %v334 = vunpack.c.h.b16 %v260
        %v335 = vunpack.c.l.b16 %v261
        %v336 = vunpack.c.h.b16 %v261
        %v337 = vunpack.c.l.b16 %v262
        %v338 = vunpack.c.h.b16 %v262
        %v339 = vunpack.c.l.b16 %v263
        %v340 = vunpack.c.h.b16 %v263
        %v341 = vunpack.c.l.b16 %v264
        %v342 = vunpack.c.h.b16 %v264
        %v343 = vunpack.c.l.b16 %v265
        %v344 = vunpack.c.h.b16 %v265
        %v345 = vunpack.c.l.b16 %v266
        %v346 = vunpack.c.h.b16 %v266
        %v347 = vunpack.c.l.b16 %v267
        %v348 = vunpack.c.h.b16 %v267
        %v349 = vunpack.c.l.b16 %v268
        %v350 = vunpack.c.h.b16 %v268
        %v351 = vunpack.c.l.b16 %v269
        %v352 = vunpack.c.h.b16 %v269
        %v353 = vunpack.c.l.b16 %v270
        %v354 = vunpack.c.h.b16 %v270
        %v355 = vunpack.c.l.b16 %v271
        %v356 = vunpack.c.h.b16 %v271
        %v357 = vunpack.c.l.b16 %v272
        %v358 = vunpack.c.h.b16 %v272
        %v359 = vunpack.c.l.b16 %v273
        %v360 = vunpack.c.h.b16 %v273
        %v361 = vunpack.c.l.b16 %v274
        %v362 = vunpack.c.h.b16 %v274
        %v363 = vunpack.c.l.b16 %v275
        %v364 = vunpack.c.h.b16 %v275
        %v365 = vunpack.c.l.b16 %v276
        %v366 = vunpack.c.h.b16 %v276
        %v367 = vunpack.c.l.b16 %v277
        %v368 = vunpack.c.h.b16 %v277
        %v369 = vunpack.c.l.b16 %v278
        %v370 = vunpack.c.h.b16 %v278
        %v371 = vunpack.c.l.b16 %v279
        %v372 = vunpack.c.h.b16 %v279
        %v373 = vunpack.c.l.b16 %v280
        %v374 = vunpack.c.h.b16 %v280
        %v375 = vunpack.c.l.b16 %v281
        %v376 = vunpack.c.h.b16 %v281
        %v377 = vunpack.c.l.b16 %v282
        %v378 = vunpack.c.h.b16 %v282
        %v379 = vpack.c.b16 %v319, %v315
        %v380 = vpack.c.b16 %v320, %v316
        %v381 = vpack.c.b16 %v321, %v317
        %v382 = vpack.c.b16 %v322, %v318
        %v383 = vpack.c.b16 %v327, %v323
        %v384 = vpack.c.b16 %v328, %v324
        %v385 = vpack.c.b16 %v329, %v325
        %v386 = vpack.c.b16 %v330, %v326
        %v387 = vpack.c.b16 %v335, %v331
        %v388 = vpack.c.b16 %v336, %v332
        %v389 = vpack.c.b16 %v337, %v333
        %v390 = vpack.c.b16 %v338, %v334
        %v391 = vpack.c.b16 %v343, %v339
        %v392 = vpack.c.b16 %v344, %v340
        %v393 = vpack.c.b16 %v345, %v341
        %v394 = vpack.c.b16 %v346, %v342
        %v395 = vpack.c.b16 %v351, %v347
        %v396 = vpack.c.b16 %v352, %v348
        %v397 = vpack.c.b16 %v353, %v349
        %v398 = vpack.c.b16 %v354, %v350
        %v399 = vpack.c.b16 %v359, %v355
        %v400 = vpack.c.b16 %v360, %v356
        %v401 = vpack.c.b16 %v361, %v357
        %v402 = vpack.c.b16 %v362, %v358
        %v403 = vpack.c.b16 %v367, %v363
        %v404 = vpack.c.b16 %v368, %v364
        %v405 = vpack.c.b16 %v369, %v365
        %v406 = vpack.c.b16 %v370, %v366
        %v407 = vpack.c.b16 %v375, %v371
        %v408 = vpack.c.b16 %v376, %v372
        %v409 = vpack.c.b16 %v377, %v373
        %v410 = vpack.c.b16 %v378, %v374
        %443 = vmatprep.subr.bf16.mxu0 %v380
        %444 = vmatpush1.bf16.msra.mxu0 %v379
        %445 = vmatprep.subr.bf16.mxu0 %v384
        %446 = vmatpush1.bf16.msra.mxu0 %v383
        %447 = vmatprep.subr.bf16.mxu0 %v388
        %448 = vmatpush1.bf16.msra.mxu0 %v387
        %449 = vmatprep.subr.bf16.mxu0 %v392
        %450 = vmatpush1.bf16.msra.mxu0 %v391
        %451 = vmatprep.subr.bf16.mxu0 %v396
        %452 = vmatpush1.bf16.msra.mxu0 %v395
        %453 = vmatprep.subr.bf16.mxu0 %v400
        %454 = vmatpush1.bf16.msra.mxu0 %v399
        %455 = vmatprep.subr.bf16.mxu0 %v404
        %456 = vmatpush1.bf16.msra.mxu0 %v403
        %457 = vmatprep.subr.bf16.mxu0 %v408
        %458 = vmatpush1.bf16.msra.mxu0 %v407
        %459 = vmatprep.subr.bf16.mxu0 0
        %460 = vmatpush1.bf16.msra.mxu0 0
        %461 = vmatprep.subr.bf16.mxu0 0
        %462 = vmatpush1.bf16.msra.mxu0 0
        %463 = vmatprep.subr.bf16.mxu0 0
        %464 = vmatpush1.bf16.msra.mxu0 0
        %465 = vmatprep.subr.bf16.mxu0 0
        %466 = vmatpush1.bf16.msra.mxu0 0
        %467 = vmatprep.subr.bf16.mxu0 0
        %468 = vmatpush1.bf16.msra.mxu0 0
        %469 = vmatprep.subr.bf16.mxu0 0
        %470 = vmatpush1.bf16.msra.mxu0 0
        %471 = vmatprep.subr.bf16.mxu0 0
        %472 = vmatpush1.bf16.msra.mxu0 0
        %473 = vmatprep.subr.bf16.mxu0 0
        %474 = vmatpush1.bf16.msra.mxu0 0
        %475 = vmatprep.mubr.bf16.mxu0 0
        %476 = vmatmul.mubr.bf16.gmra.mrb[0].mxu0 %v250
        %v477 = vpop.f32.mrb[0].mxu0
        %v478 = vadd.f32 0.0, %v477
        %v479 = vpop.f32.mrb[0].mxu0
        %v480 = vadd.f32 0.0, %v479
        %v481 = vpop.f32.mrb[0].mxu0
        %v482 = vpop.f32.mrb[0].mxu0
        %483 = vdwg.mxu0
        %484 = vmatprep.subr.bf16.mxu0 %v382
        %485 = vmatpush1.bf16.msra.mxu0 %v381
        %486 = vmatprep.subr.bf16.mxu0 %v386
        %487 = vmatpush1.bf16.msra.mxu0 %v385
        %488 = vmatprep.subr.bf16.mxu0 %v390
        %489 = vmatpush1.bf16.msra.mxu0 %v389
        %490 = vmatprep.subr.bf16.mxu0 %v394
        %491 = vmatpush1.bf16.msra.mxu0 %v393
        %492 = vmatprep.subr.bf16.mxu0 %v398
        %493 = vmatpush1.bf16.msra.mxu0 %v397
        %494 = vmatprep.subr.bf16.mxu0 %v402
        %495 = vmatpush1.bf16.msra.mxu0 %v401
        %496 = vmatprep.subr.bf16.mxu0 %v406
        %497 = vmatpush1.bf16.msra.mxu0 %v405
        %498 = vmatprep.subr.bf16.mxu0 %v410
        %499 = vmatpush1.bf16.msra.mxu0 %v409
        %500 = vmatprep.subr.bf16.mxu0 0
        %501 = vmatpush1.bf16.msra.mxu0 0
        %502 = vmatprep.subr.bf16.mxu0 0
        %503 = vmatpush1.bf16.msra.mxu0 0
        %504 = vmatprep.subr.bf16.mxu0 0
        %505 = vmatpush1.bf16.msra.mxu0 0
        %506 = vmatprep.subr.bf16.mxu0 0
        %507 = vmatpush1.bf16.msra.mxu0 0
        %508 = vmatprep.subr.bf16.mxu0 0
        %509 = vmatpush1.bf16.msra.mxu0 0
        %510 = vmatprep.subr.bf16.mxu0 0
        %511 = vmatpush1.bf16.msra.mxu0 0
        %512 = vmatprep.subr.bf16.mxu0 0
        %513 = vmatpush1.bf16.msra.mxu0 0
        %514 = vmatprep.subr.bf16.mxu0 0
        %515 = vmatpush1.bf16.msra.mxu0 0
        %516 = vmatprep.mubr.bf16.mxu0 0
        %517 = vmatmul.mubr.bf16.gmra.mrb[0].mxu0 %v250
        %v518 = vpop.f32.mrb[0].mxu0
        %v519 = vadd.f32 0.0, %v518
        %v520 = vpop.f32.mrb[0].mxu0
        %v521 = vadd.f32 0.0, %v520
        %v522 = vpop.f32.mrb[0].mxu0
        %v523 = vpop.f32.mrb[0].mxu0
        %524 = vdwg.mxu0
        %525 = vst [vmem:[%s232] sm:$0xff] %v478
        %526 = vst [vmem:[%s232 + $0x8] sm:$0xff] %v480
        %527 = vst [vmem:[%s232 + $0x10] sm:$0xff] %v519
        %528 = vst [vmem:[%s232 + $0x18] sm:$0xff] %v521
        %v529 = vadd.f32 %v478, %v480
        %v530 = vadd.f32 %v529, %v519
        %v531 = vadd.f32 %v530, %v521
        %532 = vadd.xlane.f32.xlu0 %v531
        %v533 = vpop.xlane.xlu0 %532
        %v534 = vmul.f32 %v478, %v478
        %v535 = vmul.f32 %v480, %v480
        %v536 = vmul.f32 %v519, %v519
        %v537 = vmul.f32 %v521, %v521
        %v538 = vadd.f32 %v534, %v535
        %v539 = vadd.f32 %v538, %v536
        %v540 = vadd.f32 %v539, %v537
        %541 = vadd.xlane.f32.xlu0 %v540
        %v542 = vpop.xlane.xlu0 %541
        %543 = vst [vmem:[%s239] sm:$0xff] %v533
        %544 = vst [vmem:[%s246] sm:$0xff] %v542
        %s545 = sand.u32 %s81, 1
        %s546 = scalar_lea.sflag [#allocation4], %s545
        %s547 = sand.u32 %s81, 1
        %s548 = smul.addr %s547, 32
        %s549 = scalar_lea.vmem [#allocation7], %s548
        %s550 = sand.u32 %s26, 1
        %s551 = scalar_lea.sflag [#allocation9], %s550
        %s552 = sand.u32 %s107, 1
        %s553 = smul.addr %s552, 8
        %s554 = scalar_lea.vmem [#allocation8], %s553
        %s555 = sand.u32 %s26, 1
        %s556 = scalar_lea.sflag [#allocation9], %s555
        %s557 = sand.u32 %s133, 1
        %s558 = smul.addr %s557, 8
        %s559 = scalar_lea.vmem [#allocation10], %s558
        // Predicated region
        $region37: #{tpu_custom_call.1} parent=27 // pred_check
          %p560 = pneg %p91
        $region38: #{tpu_custom_call.1} parent=27 // pred_check_branch
          %562 = sbr.rel (%p560) target = $region40
        $region39: #{tpu_custom_call.1} parent=27 // pred_region
          %s563 = smul.u32 4, %s26
          %s565 = ssub.s32 512, 512
          %566 = vsyncadd %s546, %s565
          %s567 = smul.addr %s563, 128
          %s568 = scalar_lea.hbm %s2, %s567
          %s570 = sshll.u32 %s549, 4
          %s571 = int_to_ptr.vmem [resolvable:$true] %s570
          %573 = dma.vmem_to_hbm [thread:$0]  %s571, 512, %s568, %s546
        $region40: #{tpu_custom_call.1} parent=27 // pred_fallthru
          _
        // Predicated region
        $region41: #{tpu_custom_call.1} parent=27 // pred_check
          %p574 = pneg %p117
        $region42: #{tpu_custom_call.1} parent=27 // pred_check_branch
          %576 = sbr.rel (%p574) target = $region44
        $region43: #{tpu_custom_call.1} parent=27 // pred_region
          %s578 = ssub.s32 128, 128
          %579 = vsyncadd %s551, %s578
          %s580 = smul.addr %s26, 128
          %s581 = scalar_lea.hbm %s3, %s580
          %s583 = sshll.u32 %s554, 4
          %s584 = int_to_ptr.vmem [resolvable:$true] %s583
          %586 = dma.vmem_to_hbm [thread:$0]  %s584, 128, %s581, %s551
        $region44: #{tpu_custom_call.1} parent=27 // pred_fallthru
          _
        // Predicated region
        $region45: #{tpu_custom_call.1} parent=27 // pred_check
          %p587 = pneg %p143
        $region46: #{tpu_custom_call.1} parent=27 // pred_check_branch
          %589 = sbr.rel (%p587) target = $region48
        $region47: #{tpu_custom_call.1} parent=27 // pred_region
          %s591 = ssub.s32 128, 128
          %592 = vsyncadd %s556, %s591
          %s593 = smul.addr %s26, 128
          %s594 = scalar_lea.hbm %s4, %s593
          %s596 = sshll.u32 %s559, 4
          %s597 = int_to_ptr.vmem [resolvable:$true] %s596
          %599 = dma.vmem_to_hbm [thread:$0]  %s597, 128, %s594, %s556
        $region48: #{tpu_custom_call.1} parent=27 // pred_fallthru
          _
      $region28: #{tpu_custom_call.1} parent=5 // pred_fallthru
        _
      %p600 = scmp.le.s32.totalorder 2, %s21
      // Predicated region
      $region49: #{tpu_custom_call.1} parent=5 // pred_check
        %p601 = pneg %p600
      $region50: #{tpu_custom_call.1} parent=5 // pred_check_branch
        %603 = sbr.rel (%p601) target = $region52
      $region51: #{tpu_custom_call.1} parent=5 // pred_region
        %s604 = ssub.s32 %s21, 2
        // Predicated region
        $region53: #{tpu_custom_call.1} parent=51 // pred_check
          %p605 = pneg %p97
        $region54: #{tpu_custom_call.1} parent=51 // pred_check_branch
          %607 = sbr.rel (%p605) target = $region56
        $region55: #{tpu_custom_call.1} parent=51 // pred_region
          %s608 = sand.u32 %s82, 1
          %s609 = scalar_lea.sflag [#allocation4], %s608
          %s610 = sand.u32 %s82, 1
          %s611 = smul.addr %s610, 32
          %s612 = scalar_lea.vmem [#allocation7], %s611
          %613 = dma.done %s609, 512
        $region56: #{tpu_custom_call.1} parent=51 // pred_fallthru
          _
        // Predicated region
        $region57: #{tpu_custom_call.1} parent=51 // pred_check
          %p614 = pneg %p123
        $region58: #{tpu_custom_call.1} parent=51 // pred_check_branch
          %616 = sbr.rel (%p614) target = $region60
        $region59: #{tpu_custom_call.1} parent=51 // pred_region
          %s617 = sand.u32 %s27, 1
          %s618 = scalar_lea.sflag [#allocation9], %s617
          %s619 = sand.u32 %s108, 1
          %s620 = smul.addr %s619, 8
          %s621 = scalar_lea.vmem [#allocation8], %s620
          %622 = dma.done %s618, 128
        $region60: #{tpu_custom_call.1} parent=51 // pred_fallthru
          _
        // Predicated region
        $region61: #{tpu_custom_call.1} parent=51 // pred_check
          %p623 = pneg %p149
        $region62: #{tpu_custom_call.1} parent=51 // pred_check_branch
          %625 = sbr.rel (%p623) target = $region64
        $region63: #{tpu_custom_call.1} parent=51 // pred_region
          %s626 = sand.u32 %s27, 1
          %s627 = scalar_lea.sflag [#allocation9], %s626
          %s628 = sand.u32 %s134, 1
          %s629 = smul.addr %s628, 8
          %s630 = scalar_lea.vmem [#allocation10], %s629
          %631 = dma.done %s627, 128
        $region64: #{tpu_custom_call.1} parent=51 // pred_fallthru
          _
      $region52: #{tpu_custom_call.1} parent=5 // pred_fallthru
        _
    $region6: #{tpu_custom_call.1} parent=1 // loop_footer
      %s25 = sadd.s32 1, %s21
    $region7: #{tpu_custom_call.1} parent=1 // loop_footer_branch
      %20 = sbr.rel target = $region3
    $region8: #{tpu_custom_call.1} parent=1 // loop_exit
      _
    %632 = vsyncpa [#allocation3], 1
    %s633 = scalar_lea.sflag [#allocation3], 1
    %634 = vsyncpa %s633, 1
    %635 = vsyncpa [#allocation6], 1
    %s636 = scalar_lea.sflag [#allocation6], 1
    %637 = vsyncpa %s636, 1
    %638 = vsyncpa [#allocation4], 1
    %s639 = scalar_lea.sflag [#allocation4], 1
    %640 = vsyncpa %s639, 1
    %641 = vsyncpa [#allocation9], 1
    %s642 = scalar_lea.sflag [#allocation9], 1
    %643 = vsyncpa %s642, 1

</llo_original>
